<compile_context>
chip_gen: v7x
topology: tpu7x:2x2x1
jax: 0.10.0
libtpu: 0.0.40
codegen_flags: <defaults>
</compile_context>

<pallas_src>
import jax
import jax.numpy as jnp
from jax.experimental import pallas as pl
from jax.experimental.pallas import tpu as pltpu

_LANES = 128


def _tanh_kernel(x_ref, o_ref):
    # Elementwise tanh on the whole VMEM tile (EUP handles tanh).
    o_ref[...] = jnp.tanh(x_ref[...])


def tanh_pallas(x: jax.Array, *, tile_rows: int = 4096) -> jax.Array:
    """Elementwise tanh via a Pallas TPU kernel (floating dtypes, any shape)."""
    if not jnp.issubdtype(x.dtype, jnp.floating):
        raise TypeError(f"tanh_pallas requires a floating dtype, got {x.dtype}")

    orig_shape = x.shape
    n = x.size
    if n == 0:
        return x

    rows = pl.cdiv(n, _LANES)
    pad = rows * _LANES - n

    flat = x.reshape(-1)
    if pad:
        # tanh(0) == 0, so zero padding is safe; sliced off afterwards.
        flat = jnp.pad(flat, (0, pad))
    x2d = flat.reshape(rows, _LANES)

    # Sublane packing: 8 rows/vreg for 4-byte dtypes, 16 for 2-byte, 32 for 1-byte.
    itemsize = jnp.dtype(x.dtype).itemsize
    sub = {1: 32, 2: 16, 4: 8}.get(itemsize, 8)

    if rows <= tile_rows:
        # Single block covering the full array extent (no divisibility
        # requirement when block dim == array dim).
        tr = rows
    else:
        # Multi-block streaming; keep tr sublane-aligned. The last grid step may
        # see a partial block — Pallas masks the out-of-range portion.
        tr = max(sub, (tile_rows // sub) * sub)
    grid_rows = pl.cdiv(rows, tr)

    out2d = pl.pallas_call(
        _tanh_kernel,
        out_shape=jax.ShapeDtypeStruct((rows, _LANES), x.dtype),
        grid=(grid_rows,),
        in_specs=[pl.BlockSpec((tr, _LANES), lambda i: (i, 0))],
        out_specs=pl.BlockSpec((tr, _LANES), lambda i: (i, 0)),
        compiler_params=pltpu.CompilerParams(
            dimension_semantics=("parallel",),
        ),
    )(x2d)

    if pad:
        return out2d.reshape(-1)[:n].reshape(orig_shape)
    return out2d.reshape(orig_shape)


if __name__ == "__main__":
    key = jax.random.PRNGKey(0)

    # Primary test: NCHW input, consistent with PyTorch conventions.
    x = jax.random.normal(key, (2, 4, 16, 16), dtype=jnp.float32)
    y = tanh_pallas(x)
    jax.block_until_ready(y)
    assert y.shape == x.shape and y.dtype == x.dtype
    assert jnp.allclose(y, jnp.tanh(x), atol=1e-6), "mismatch vs jnp.tanh (f32)"

    # Exercise the lane-pad path (n % 128 != 0).
    x2 = jax.random.normal(jax.random.PRNGKey(1), (3, 5, 7, 11), dtype=jnp.float32)
    y2 = tanh_pallas(x2)
    jax.block_until_ready(y2)
    assert jnp.allclose(y2, jnp.tanh(x2), atol=1e-6), "mismatch vs jnp.tanh (pad)"

    # Exercise the multi-block path with a partial final block (small tile).
    x3 = jax.random.normal(jax.random.PRNGKey(2), (2, 4, 40, 40), dtype=jnp.float32)
    y3 = tanh_pallas(x3, tile_rows=64)
    jax.block_until_ready(y3)
    assert jnp.allclose(y3, jnp.tanh(x3), atol=1e-6), "mismatch vs jnp.tanh (grid)"

    # bf16 runs in its native dtype (no upcast in the wrapper).
    x4 = jax.random.normal(jax.random.PRNGKey(3), (2, 4, 16, 16), dtype=jnp.bfloat16)
    y4 = tanh_pallas(x4)
    jax.block_until_ready(y4)
    assert y4.dtype == jnp.bfloat16
    assert jnp.allclose(y4.astype(jnp.float32),
                        jnp.tanh(x4).astype(jnp.float32), atol=1e-2), "mismatch (bf16)"

    print("KERNEL_OK")
</pallas_src>

<mosaic_0001>
module attributes {stable_mosaic.version = 11 : i64} {
  func.func @_tanh_kernel(%arg0: i32, %arg1: memref<16x128xf32, #tpu.memory_space<vmem>>, %arg2: memref<16x128xf32, #tpu.memory_space<vmem>>) attributes {dimension_semantics = [#tpu.dimension_semantics<parallel>], iteration_bounds = array<i64: 1>, scalar_prefetch = 0 : i64, scratch_operands = 0 : i64, tpu.core_type = #tpu.core_type<tc>, window_params = [{transform_indices = @transform_0, window_bounds = array<i64: 16, 128>}, {transform_indices = @transform_1, window_bounds = array<i64: 16, 128>}]} {
    %c0 = arith.constant 0 : index
    %c0_0 = arith.constant 0 : index
    %0 = vector.load %arg1[%c0, %c0_0] : memref<16x128xf32, #tpu.memory_space<vmem>>, vector<16x128xf32>
    %1 = math.tanh %0 : vector<16x128xf32>
    %c0_1 = arith.constant 0 : index
    %c0_2 = arith.constant 0 : index
    %2 = vector.load %arg2[%c0_1, %c0_2] : memref<16x128xf32, #tpu.memory_space<vmem>>, vector<16x128xf32>
    tpu.vector_store %arg2[%c0_1, %c0_2], %1 {strides = array<i32>} : memref<16x128xf32, #tpu.memory_space<vmem>>, vector<16x128xf32>,
    return
  }
  func.func @transform_0(%arg0: i32) -> (i32, i32) {
    %c0_i32 = arith.constant 0 : i32
    %c0_i32_0 = arith.constant 0 : i32
    return %arg0, %c0_i32 : i32, i32
  }
  func.func @transform_1(%arg0: i32) -> (i32, i32) {
    %c0_i32 = arith.constant 0 : i32
    %c0_i32_0 = arith.constant 0 : i32
    return %arg0, %c0_i32 : i32, i32
  }
}

</mosaic_0001>

<llo_original>
// kernel: tpu_custom_call.1
$region0: #{tpu_custom_call.1}
  #allocation0 [shape = 'u32[]', space=smem, size = 0x4, offset = 0x4, fixed_abs, tag = 'smem constant byte address 0x4 - core index']
  #allocation1 [shape = 'u32[144,128]{1,0:T(1,128)}', space=vmem, size = 0x12000, scoped, tag = 'internal scratch']
  %s0 = inlined_call_operand.hbm [shape: f32[16,128], index: 0, kind: input, shape index: {}]
  %s1 = inlined_call_operand.hbm [shape: f32[16,128], index: 1, kind: output, shape index: {}]
  %s2 = sld [smem:[#allocation0]]
  $region18: #{tpu_custom_call.1} parent=0
    _
  %s4 = ssub.s32 1, %s2
  %s5 = scalar_select 0, %s4, %s2
  $region1: #{tpu_custom_call.1} parent=0
    #allocation2 [shape = 'u8[8192]{0}', space=vmem, size = 0x2000, scoped, tag = 'input window, operand 0, single buffered']
    #allocation3 [shape = 's32[1]{0}', space=sflag, size = 0x4, scoped, tag = 'scoped memory for tpu_custom_call.1']
    #allocation4 [shape = 's32[1]{0}', space=sflag, size = 0x4, scoped, tag = 'scoped memory for tpu_custom_call.1']
    #allocation5 [shape = 'u8[8192]{0}', space=vmem, size = 0x2000, scoped, tag = 'output window, operand 0, single buffered']
    %6 = vsyncpa [#allocation3], 0
    %7 = vsyncpa [#allocation4], 0
    // Predicated region
    $region2: #{tpu_custom_call.1} parent=1 // pred_check
      _
    $region3: #{tpu_custom_call.1} parent=1 // pred_check_branch
      %9 = sbr.rel (0) target = $region5
    $region4: #{tpu_custom_call.1} parent=1 // pred_region
      %s11 = ssub.s32 256, 256
      %12 = vsyncadd [#allocation3], %s11
      %s13 = sshll.u32 [#allocation2], 4
      %s14 = int_to_ptr.vmem [resolvable:$true] %s13
      %19 = dma.hbm_to_vmem [thread:$0]  %s0, 256, %s14, [#allocation3], 128, 128, 8
    $region5: #{tpu_custom_call.1} parent=1 // pred_fallthru
      _
    // Predicated region
    $region6: #{tpu_custom_call.1} parent=1 // pred_check
      _
    $region7: #{tpu_custom_call.1} parent=1 // pred_check_branch
      %21 = sbr.rel (0) target = $region9
    $region8: #{tpu_custom_call.1} parent=1 // pred_region
      %22 = dma.done [#allocation3], 256
    $region9: #{tpu_custom_call.1} parent=1 // pred_fallthru
      _
    %v23 = vld [vmem:[#allocation2] sm:$0xff]
    %v24 = vld [vmem:[#allocation2 + $0x8] sm:$0xff]
    %v25 = vtanh.pop %v23
    %v26 = vtanh.pop %v24
    %27 = vst [vmem:[#allocation5] sm:$0xff] %v25
    %28 = vst [vmem:[#allocation5 + $0x8] sm:$0xff] %v26
    // Predicated region
    $region10: #{tpu_custom_call.1} parent=1 // pred_check
      _
    $region11: #{tpu_custom_call.1} parent=1 // pred_check_branch
      %30 = sbr.rel (0) target = $region13
    $region12: #{tpu_custom_call.1} parent=1 // pred_region
      %s32 = ssub.s32 256, 256
      %33 = vsyncadd [#allocation4], %s32
      %s34 = sshll.u32 [#allocation5], 4
      %s35 = int_to_ptr.vmem [resolvable:$true] %s34
      %40 = dma.vmem_to_hbm [thread:$0]  %s35, 256, %s1, [#allocation4], 128, 128, 8
    $region13: #{tpu_custom_call.1} parent=1 // pred_fallthru
      _
    // Predicated region
    $region14: #{tpu_custom_call.1} parent=1 // pred_check
      _
    $region15: #{tpu_custom_call.1} parent=1 // pred_check_branch
      %42 = sbr.rel (0) target = $region17
    $region16: #{tpu_custom_call.1} parent=1 // pred_region
      %43 = dma.done [#allocation4], 256
    $region17: #{tpu_custom_call.1} parent=1 // pred_fallthru
      _
    %44 = vsyncpa [#allocation3], 1
    %45 = vsyncpa [#allocation4], 1

</llo_original>
